<compile_context>
chip_gen: v5e
topology: v5e:2x2
jax: 0.10.0
libtpu: 0.0.40
codegen_flags: <defaults>
</compile_context>

<pallas_src>
import math

import jax
import jax.numpy as jnp
from jax.experimental import pallas as pl
from jax.experimental.pallas import tpu as pltpu


def _scaler_kernel(x_ref, off_ref, scl_ref, o_ref):
    # Pure elementwise hot path.  offset/scale arrive as f32 (1, f_tile) rows
    # and broadcast over the row axis of the block.
    x = x_ref[...].astype(jnp.float32)
    o_ref[...] = ((x - off_ref[...]) * scl_ref[...]).astype(o_ref.dtype)


def _round_up(a, b):
    return ((a + b - 1) // b) * b


def _sublane_pack(itemsize):
    # sub-32-bit dtypes pack along sublanes: 8 rows for 4 B, 16 for 2 B, 32 for 1 B
    return {4: 8, 2: 16, 1: 32}.get(int(itemsize), 8)


def scaler_forward(x, offset=None, scale=None, *,
                   out_dtype=jnp.float32,
                   target_step_bytes=4 << 20,
                   min_pallas_bytes=2 << 20):
    """Apply ((x - offset) * scale).astype(out_dtype), like Scaler.forward.

    offset / scale may be None (the corresponding op is skipped, matching the
    PyTorch module).  out_dtype defaults to float32 to match `.float()`; pass
    bf16 only if the caller accepts a relaxed contract.
    """
    N, F = x.shape

    off = (jnp.zeros((F,), jnp.float32) if offset is None
           else jnp.asarray(offset, jnp.float32))
    scl = (jnp.ones((F,), jnp.float32) if scale is None
           else jnp.asarray(scale, jnp.float32))

    x_bytes = jnp.dtype(x.dtype).itemsize
    out_bytes = jnp.dtype(out_dtype).itemsize
    per_elem = x_bytes + out_bytes

    # Tiny problems: pallas_call launch / pipeline warmup costs more than the
    # whole transfer; the fused XLA elementwise expression is already at the
    # HBM roofline there.
    if N * F * per_elem < min_pallas_bytes:
        return ((x.astype(jnp.float32) - off[None, :])
                * scl[None, :]).astype(out_dtype)

    # ---- Narrow-F lane-dense flattening (typical tabular Scaler: F << 128) ---
    # Reshape (N, F) -> (M, L) with L a multiple of both F and 128 (free,
    # row-major contiguous reshape) and tile offset/scale to length L, so every
    # output store is a full-lane, unmasked vst.
    M, W = N, F
    flattened = False
    if F % 128 != 0:
        L = F * 128 // math.gcd(F, 128)          # lcm(F, 128)
        if L <= 2048 and (N * F) % L == 0:
            reps = L // F
            x = x.reshape((N * F) // L, L)
            off = jnp.tile(off, reps)
            scl = jnp.tile(scl, reps)
            M, W = x.shape
            flattened = True

    sub_pack = _sublane_pack(x_bytes)

    # ---- generation-aware VMEM budget ----------------------------------------
    try:
        vmem_cap = int(pltpu.get_tpu_info().vmem_capacity_bytes)
    except Exception:
        vmem_cap = 64 << 20                      # v7x-safe default
    vmem_budget = min(int(vmem_cap * 0.7), 96 << 20)

    # ---- tile selection (byte-targeted) ---------------------------------------
    Ww = _round_up(W, 128)                       # lane-rounded feature width
    # Prefer a full-width feature block (keeps params resident, lane-dense
    # stores, no column re-tiling); split only if even a minimal-row block
    # would not fit the double-buffered VMEM budget.
    f_tile = Ww
    while f_tile > 128 and 2 * sub_pack * f_tile * per_elem > vmem_budget:
        f_tile = _round_up((f_tile + 1) // 2, 128)

    max_rows = max(sub_pack,
                   (vmem_budget // (2 * f_tile * per_elem)) // sub_pack * sub_pack)
    row_tile = target_step_bytes // (f_tile * per_elem)
    row_tile = min(row_tile, _round_up(M, sub_pack), max_rows)
    row_tile = _round_up(max(row_tile, 1), sub_pack)

    n_f = pl.cdiv(W, f_tile)
    # Feed both TensorCores on v7x: keep at least ~4 grid steps when possible.
    if pl.cdiv(M, row_tile) * n_f < 4:
        rt = _round_up(max(pl.cdiv(M, 4), sub_pack), sub_pack)
        row_tile = max(sub_pack, min(row_tile, rt))
    n_r = pl.cdiv(M, row_tile)
    grid = (n_r, n_f)

    # Pad only the tiny 1-D params to the grid extent so every param read is
    # deterministic and in-bounds (scale pads with 1.0 to stay finite).
    Wp = n_f * f_tile
    off_p = jnp.pad(off, (0, Wp - W)).reshape(1, Wp)
    scl_p = jnp.pad(scl, (0, Wp - W), constant_values=1.0).reshape(1, Wp)

    # Double-buffered x + out blocks plus the two tiny param rows, with headroom.
    block_vmem = 2 * (row_tile * f_tile * per_elem + 2 * f_tile * 4)
    vmem_limit = int(min(max(block_vmem + (2 << 20), 16 << 20), vmem_budget))

    out = pl.pallas_call(
        _scaler_kernel,
        out_shape=jax.ShapeDtypeStruct((M, W), out_dtype),
        grid_spec=pltpu.PrefetchScalarGridSpec(
            num_scalar_prefetch=0,
            grid=grid,
            in_specs=[
                pl.BlockSpec((row_tile, f_tile), lambda i, j: (i, j)),
                pl.BlockSpec((1, f_tile), lambda i, j: (0, j)),
                pl.BlockSpec((1, f_tile), lambda i, j: (0, j)),
            ],
            out_specs=pl.BlockSpec((row_tile, f_tile), lambda i, j: (i, j)),
        ),
        compiler_params=pltpu.CompilerParams(
            dimension_semantics=("parallel", "parallel"),
            vmem_limit_bytes=vmem_limit,
        ),
    )(x, off_p, scl_p)

    if flattened:
        out = out.reshape(N, F)
    return out


if __name__ == "__main__":
    key = jax.random.PRNGKey(0)
    kx, ko, ks = jax.random.split(key, 3)

    N, F = 16, 32  # small test shape: 16 samples, 32 features
    x = jax.random.normal(kx, (N, F), dtype=jnp.float32)
    offset = jax.random.normal(ko, (F,), dtype=jnp.float32)
    scale = jax.random.uniform(ks, (F,), dtype=jnp.float32, minval=0.5, maxval=2.0)

    ref = ((x - offset[None, :]) * scale[None, :]).astype(jnp.float32)

    # 1) Force the Pallas path at this tiny shape; F=32 takes the lane-dense
    #    flatten path (L = lcm(32, 128) = 128, M = 4 rows).
    out = jax.block_until_ready(scaler_forward(x, offset, scale, min_pallas_bytes=0))
    assert out.dtype == jnp.float32 and out.shape == (N, F)
    assert jnp.allclose(out, ref, atol=1e-6, rtol=1e-6)

    # 2) bf16 input path: cast happens inside the kernel; output stays float32.
    x_bf = x.astype(jnp.bfloat16)
    out_bf = jax.block_until_ready(scaler_forward(x_bf, offset, scale, min_pallas_bytes=0))
    ref_bf = (x_bf.astype(jnp.float32) - offset[None, :]) * scale[None, :]
    assert out_bf.dtype == jnp.float32
    assert jnp.allclose(out_bf, ref_bf, atol=1e-6, rtol=1e-6)

    # 3) Non-tile-multiple shape exercising masked edge blocks (no x padding,
    #    no output slice): lcm(200, 128) is too large to flatten.
    N2, F2 = 300, 200
    k1, k2, k3 = jax.random.split(jax.random.PRNGKey(1), 3)
    x2 = jax.random.normal(k1, (N2, F2), dtype=jnp.float32)
    off2 = jax.random.normal(k2, (F2,), dtype=jnp.float32)
    scl2 = jax.random.uniform(k3, (F2,), dtype=jnp.float32, minval=0.5, maxval=2.0)
    out2 = jax.block_until_ready(scaler_forward(x2, off2, scl2, min_pallas_bytes=0))
    ref2 = ((x2 - off2[None, :]) * scl2[None, :]).astype(jnp.float32)
    assert out2.shape == (N2, F2)
    assert jnp.allclose(out2, ref2, atol=1e-6, rtol=1e-6)

    # 4) offset=None (subtraction skipped) + tiny-shape jnp fallback path.
    out3 = jax.block_until_ready(scaler_forward(x, None, scale))
    assert jnp.allclose(out3, x * scale[None, :], atol=1e-6, rtol=1e-6)

    print("KERNEL_OK")
</pallas_src>

<mosaic_0001>
module attributes {stable_mosaic.version = 11 : i64} {
  func.func @_scaler_kernel(%arg0: i32, %arg1: i32, %arg2: memref<8x128xf32, #tpu.memory_space<vmem>>, %arg3: memref<1x128xf32, #tpu.memory_space<vmem>>, %arg4: memref<1x128xf32, #tpu.memory_space<vmem>>, %arg5: memref<8x128xf32, #tpu.memory_space<vmem>>) attributes {dimension_semantics = [#tpu.dimension_semantics<parallel>, #tpu.dimension_semantics<parallel>], iteration_bounds = array<i64: 1, 1>, scalar_prefetch = 0 : i64, scratch_operands = 0 : i64, tpu.core_type = #tpu.core_type<tc>, window_params = [{transform_indices = @transform_0, window_bounds = array<i64: 8, 128>}, {transform_indices = @transform_1, window_bounds = array<i64: 1, 128>}, {transform_indices = @transform_2, window_bounds = array<i64: 1, 128>}, {transform_indices = @transform_3, window_bounds = array<i64: 8, 128>}]} {
    %c0 = arith.constant 0 : index
    %c0_0 = arith.constant 0 : index
    %0 = vector.load %arg2[%c0, %c0_0] : memref<8x128xf32, #tpu.memory_space<vmem>>, vector<8x128xf32>
    %c0_1 = arith.constant 0 : index
    %c0_2 = arith.constant 0 : index
    %1 = vector.load %arg3[%c0_1, %c0_2] : memref<1x128xf32, #tpu.memory_space<vmem>>, vector<1x128xf32>
    %2 = vector.broadcast %1 : vector<1x128xf32> to vector<8x128xf32>
    %3 = arith.subf %0, %2 : vector<8x128xf32>
    %c0_3 = arith.constant 0 : index
    %c0_4 = arith.constant 0 : index
    %4 = vector.load %arg4[%c0_3, %c0_4] : memref<1x128xf32, #tpu.memory_space<vmem>>, vector<1x128xf32>
    %5 = vector.broadcast %4 : vector<1x128xf32> to vector<8x128xf32>
    %6 = arith.mulf %3, %5 : vector<8x128xf32>
    %c0_5 = arith.constant 0 : index
    %c0_6 = arith.constant 0 : index
    %7 = vector.load %arg5[%c0_5, %c0_6] : memref<8x128xf32, #tpu.memory_space<vmem>>, vector<8x128xf32>
    tpu.vector_store %arg5[%c0_5, %c0_6], %6 {strides = array<i32>} : memref<8x128xf32, #tpu.memory_space<vmem>>, vector<8x128xf32>,
    return
  }
  func.func @transform_0(%arg0: i32, %arg1: i32) -> (i32, i32) {
    %c0_i32 = arith.constant 0 : i32
    return %arg0, %arg1 : i32, i32
  }
  func.func @transform_1(%arg0: i32, %arg1: i32) -> (i32, i32) {
    %c0_i32 = arith.constant 0 : i32
    %c0_i32_0 = arith.constant 0 : i32
    return %c0_i32, %arg1 : i32, i32
  }
  func.func @transform_2(%arg0: i32, %arg1: i32) -> (i32, i32) {
    %c0_i32 = arith.constant 0 : i32
    %c0_i32_0 = arith.constant 0 : i32
    return %c0_i32, %arg1 : i32, i32
  }
  func.func @transform_3(%arg0: i32, %arg1: i32) -> (i32, i32) {
    %c0_i32 = arith.constant 0 : i32
    return %arg0, %arg1 : i32, i32
  }
}

</mosaic_0001>

<llo_original>
// kernel: tpu_custom_call.1
$region0: #{tpu_custom_call.1}
  #allocation0 [shape = 'u32[]', space=smem, size = 0x4, offset = 0x4, fixed_abs, tag = 'smem constant byte address 0x4 - core index']
  #allocation1 [shape = 'u32[72,128]{1,0:T(1,128)}', space=vmem, size = 0x9000, scoped, tag = 'internal scratch']
  %s0 = inlined_call_operand.hbm [shape: f32[4,128], index: 0, kind: input, shape index: {}]
  %s1 = inlined_call_operand.hbm [shape: f32[1,128], index: 1, kind: input, shape index: {}]
  %s2 = inlined_call_operand.vmem [shape: f32[1,128], index: 2, kind: input, shape index: {}]
  %s3 = inlined_call_operand.hbm [shape: f32[4,128], index: 3, kind: output, shape index: {}]
  %s4 = sld [smem:[#allocation0]]
  $region30: #{tpu_custom_call.1} parent=0
    _
  %s6 = ssub.s32 1, %s4
  %s7 = scalar_select 0, %s6, %s4
  $region1: #{tpu_custom_call.1} parent=0
    #allocation2 [shape = 'u8[4096]{0}', space=vmem, size = 0x1000, scoped, tag = 'input window, operand 0, single buffered']
    #allocation3 [shape = 's32[1]{0}', space=sflag, size = 0x4, scoped, tag = 'scoped memory for tpu_custom_call.1']
    #allocation4 [shape = 's32[1]{0}', space=sflag, size = 0x4, scoped, tag = 'scoped memory for tpu_custom_call.1']
    #allocation5 [shape = 'u8[512]{0}', space=vmem, size = 0x400, scoped, tag = 'input window, operand 1, single buffered']
    #allocation6 [shape = 's32[1]{0}', space=sflag, size = 0x4, scoped, tag = 'scoped memory for tpu_custom_call.1']
    #allocation7 [shape = 'u8[4096]{0}', space=vmem, size = 0x1000, scoped, tag = 'output window, operand 0, single buffered']
    %8 = vsyncpa [#allocation3], 0
    %9 = vsyncpa [#allocation6], 0
    %10 = vsyncpa [#allocation4], 0
    // Predicated region
    $region2: #{tpu_custom_call.1} parent=1 // pred_check
      _
    $region3: #{tpu_custom_call.1} parent=1 // pred_check_branch
      %12 = sbr.rel (0) target = $region5
    $region4: #{tpu_custom_call.1} parent=1 // pred_region
      %14 = vsyncadd [#allocation3], 64
      %s15 = sshll.u32 %s0, 4
      %s16 = int_to_ptr.hbm [resolvable:$true] %s15
      %s17 = sshll.u32 [#allocation2], 4
      %s18 = int_to_ptr.vmem [resolvable:$true] %s17
      %23 = dma.hbm_to_vmem [thread:$0]  %s16, 64, %s18, [#allocation3], 64, 64, 4
    $region5: #{tpu_custom_call.1} parent=1 // pred_fallthru
      _
    // Predicated region
    $region6: #{tpu_custom_call.1} parent=1 // pred_check
      _
    $region7: #{tpu_custom_call.1} parent=1 // pred_check_branch
      %25 = sbr.rel (0) target = $region9
    $region8: #{tpu_custom_call.1} parent=1 // pred_region
      %27 = vsyncadd [#allocation6], 0
      %s29 = sshll.u32 %s1, 4
      %s30 = int_to_ptr.hbm [resolvable:$true] %s29
      %s31 = sshll.u32 [#allocation5], 4
      %s32 = int_to_ptr.vmem [resolvable:$true] %s31
      %34 = dma.hbm_to_vmem [thread:$0]  %s30, 16, %s32, [#allocation6]
    $region9: #{tpu_custom_call.1} parent=1 // pred_fallthru
      _
    // Predicated region
    $region10: #{tpu_custom_call.1} parent=1 // pred_check
      _
    $region11: #{tpu_custom_call.1} parent=1 // pred_check_branch
      %36 = sbr.rel (0) target = $region13
    $region12: #{tpu_custom_call.1} parent=1 // pred_region
      _
    $region13: #{tpu_custom_call.1} parent=1 // pred_fallthru
      _
    // Predicated region
    $region14: #{tpu_custom_call.1} parent=1 // pred_check
      _
    $region15: #{tpu_custom_call.1} parent=1 // pred_check_branch
      %38 = sbr.rel (0) target = $region17
    $region16: #{tpu_custom_call.1} parent=1 // pred_region
      %40 = dma.done [#allocation3], 128
    $region17: #{tpu_custom_call.1} parent=1 // pred_fallthru
      _
    // Predicated region
    $region18: #{tpu_custom_call.1} parent=1 // pred_check
      _
    $region19: #{tpu_custom_call.1} parent=1 // pred_check_branch
      %42 = sbr.rel (0) target = $region21
    $region20: #{tpu_custom_call.1} parent=1 // pred_region
      %44 = dma.done [#allocation6], 16
    $region21: #{tpu_custom_call.1} parent=1 // pred_fallthru
      _
    %v45 = vld [vmem:[#allocation2] sm:$0xff]
    %v46 = vld [vmem:[#allocation5] sm:$0x1]
    %v48 = vperm.slane %v46, 0
    %v50 = vsub.f32 %v45, %v48
    %v51 = vld [vmem:[%s2] sm:$0x1]
    %v53 = vperm.slane %v51, 0
    %v55 = vmul.f32 %v50, %v53
    %56 = vst [vmem:[#allocation7] sm:$0xff] %v55
    // Predicated region
    $region22: #{tpu_custom_call.1} parent=1 // pred_check
      _
    $region23: #{tpu_custom_call.1} parent=1 // pred_check_branch
      %58 = sbr.rel (0) target = $region25
    $region24: #{tpu_custom_call.1} parent=1 // pred_region
      %60 = vsyncadd [#allocation4], 64
      %s61 = sshll.u32 [#allocation7], 4
      %s62 = int_to_ptr.vmem [resolvable:$true] %s61
      %s63 = sshll.u32 %s3, 4
      %s64 = int_to_ptr.hbm [resolvable:$true] %s63
      %69 = dma.vmem_to_hbm [thread:$0]  %s62, 64, %s64, [#allocation4], 64, 64, 4
    $region25: #{tpu_custom_call.1} parent=1 // pred_fallthru
      _
    // Predicated region
    $region26: #{tpu_custom_call.1} parent=1 // pred_check
      _
    $region27: #{tpu_custom_call.1} parent=1 // pred_check_branch
      %71 = sbr.rel (0) target = $region29
    $region28: #{tpu_custom_call.1} parent=1 // pred_region
      %73 = dma.done [#allocation4], 128
    $region29: #{tpu_custom_call.1} parent=1 // pred_fallthru
      _
    %74 = vsyncpa [#allocation3], 1
    %75 = vsyncpa [#allocation6], 1
    %76 = vsyncpa [#allocation4], 1

</llo_original>
